<compile_context>
chip_gen: v6e
topology: v6e:2x2x1
jax: 0.10.0
libtpu: 0.0.40
codegen_flags: <defaults>
</compile_context>

<pallas_src>
import jax
import jax.numpy as jnp
from jax import lax
from jax.experimental import pallas as pl
from jax.experimental.pallas import tpu as pltpu

_OUT_ROWS = 8  # out_dim (=2) padded up to one full sublane group


def _round_up(n: int, m: int) -> int:
    return ((n + m - 1) // m) * m


# dot_general dims for A[M,K] . B[N,K]^T -> [M,N]  (same "NT" form the official
# flash-attention Pallas kernel uses for q @ k^T).
_NT_DIMS = (((1,), (1,)), ((), ()))


def ontop_modeler_kernel(x_ref, w1_ref, b1_ref, w2_ref, b2_ref, o_ref):
    # x tile: [TB, in] f32 -> bf16 MXU operands, f32 accumulation.
    x = x_ref[...].astype(jnp.bfloat16)                        # [TB, in]
    # h^T = w1 @ x^T : [H, TB]   (NT matmul, no explicit transpose needed)
    h_t = lax.dot_general(w1_ref[...], x, _NT_DIMS,
                          preferred_element_type=jnp.float32)
    h_t = jnp.tanh(h_t + b1_ref[...])                          # + [H,1]; EUP tanh
    # y^T = w2 @ h^T : [8, TB]   (lane-dense output tile)
    y_t = jnp.dot(w2_ref[...], h_t.astype(jnp.bfloat16),
                  preferred_element_type=jnp.float32)
    o_ref[...] = (y_t + b2_ref[...]).astype(o_ref.dtype)       # full vst, no mask


def ontop_modeler_forward(x, w1, b1, w2, b2, *, block_b: int = 1024):
    """PyTorch nn.Linear layouts:
      x:  [B, input_size]  (f32)
      w1: [hidden, input_size]   b1: [hidden]
      w2: [2, hidden]            b2: [2]
    Returns [B, 2] == linear2(tanh(linear1(x))).
    `block_b` should be a multiple of 128 (default 1024).
    """
    B, in_dim = x.shape
    H = w1.shape[0]
    out_dim = w2.shape[0]

    # One-time weight prep: bf16 weights, f32 column biases, pad the tiny
    # output dim (2) up to 8 rows with zeros (keeps semantics exactly).
    w1_bf = jnp.asarray(w1).astype(jnp.bfloat16)                     # [H, in]
    b1_c = jnp.asarray(b1).reshape(H, 1).astype(jnp.float32)         # [H, 1]
    w2_bf = jnp.zeros((_OUT_ROWS, H), jnp.bfloat16).at[:out_dim].set(
        jnp.asarray(w2).astype(jnp.bfloat16))                        # [8, H]
    b2_c = jnp.zeros((_OUT_ROWS, 1), jnp.float32).at[:out_dim, 0].set(
        jnp.asarray(b2).astype(jnp.float32))                         # [8, 1]

    # Batch tile: big (>=512) in the large-B regime, clamped (8-aligned) for
    # small inputs.  VMEM per step is well under limits even double-buffered.
    tb = min(block_b, _round_up(B, 8))
    B_pad = _round_up(B, tb)
    x_p = x if B_pad == B else jnp.pad(x, ((0, B_pad - B), (0, 0)))
    grid = (B_pad // tb,)

    bytes_accessed = (B_pad * in_dim * 4           # x read (f32)
                      + _OUT_ROWS * B_pad * 4      # out write (f32)
                      + H * in_dim * 2 + _OUT_ROWS * H * 2   # bf16 weights
                      + (H + _OUT_ROWS) * 4)       # biases

    out_t = pl.pallas_call(
        ontop_modeler_kernel,
        out_shape=jax.ShapeDtypeStruct((_OUT_ROWS, B_pad), jnp.float32),
        grid=grid,
        in_specs=[
            pl.BlockSpec((tb, in_dim), lambda i: (i, 0)),       # x: streamed tiles
            pl.BlockSpec((H, in_dim), lambda i: (0, 0)),        # w1: resident
            pl.BlockSpec((H, 1), lambda i: (0, 0)),             # b1: resident
            pl.BlockSpec((_OUT_ROWS, H), lambda i: (0, 0)),     # w2 (row-padded)
            pl.BlockSpec((_OUT_ROWS, 1), lambda i: (0, 0)),     # b2 (row-padded)
        ],
        out_specs=pl.BlockSpec((_OUT_ROWS, tb), lambda i: (0, i)),
        compiler_params=pltpu.CompilerParams(
            dimension_semantics=("parallel",),      # both TCs on v7x
            vmem_limit_bytes=32 * 1024 * 1024,      # safe on v5e/v6e/v7x
        ),
        cost_estimate=pl.CostEstimate(
            flops=2 * B_pad * H * (in_dim + _OUT_ROWS),
            transcendentals=B_pad * H,
            bytes_accessed=bytes_accessed,
        ),
    )(x_p, w1_bf, b1_c, w2_bf, b2_c)

    # [8, B_pad] -> [B, 2]  (tiny XLA slice + transpose)
    return out_t[:out_dim, :B].T


if __name__ == "__main__":
    # Small shapes consistent with Ontop_Modeler(input_size, hidden_nodes).
    batch = 8
    input_size = 32
    hidden_nodes = 32
    out_dim = 2

    key = jax.random.PRNGKey(0)
    kx, kw1, kb1, kw2, kb2 = jax.random.split(key, 5)

    x = jax.random.normal(kx, (batch, input_size), dtype=jnp.float32)

    # PyTorch nn.Linear layouts: weight [out, in], bias [out].
    w1 = jax.random.normal(kw1, (hidden_nodes, input_size), dtype=jnp.float32) * 0.1
    b1 = jax.random.normal(kb1, (hidden_nodes,), dtype=jnp.float32) * 0.1
    w2 = jax.random.normal(kw2, (out_dim, hidden_nodes), dtype=jnp.float32) * 0.1
    b2 = jax.random.normal(kb2, (out_dim,), dtype=jnp.float32) * 0.1

    y = ontop_modeler_forward(x, w1, b1, w2, b2)
    y = jax.block_until_ready(y)

    # Reference (plain JAX, f32). Kernel uses bf16 MXU operands with f32
    # accumulation -> loosened tolerance.
    ref = jnp.tanh(x @ w1.T + b1) @ w2.T + b2
    assert y.shape == (batch, out_dim)
    assert jnp.allclose(y, ref, atol=1e-2, rtol=1e-2), (
        f"max abs err {jnp.max(jnp.abs(y - ref))}")

    # TODO(synk): nn.BCELoss / training loop are not part of forward(); not implemented.
    print("KERNEL_OK")
</pallas_src>

<mosaic_0001>
module attributes {stable_mosaic.version = 11 : i64} {
  func.func @ontop_modeler_kernel(%arg0: i32, %arg1: memref<8x32xf32, #tpu.memory_space<vmem>>, %arg2: memref<32x32xbf16, #tpu.memory_space<vmem>>, %arg3: memref<32x1xf32, #tpu.memory_space<vmem>>, %arg4: memref<8x32xbf16, #tpu.memory_space<vmem>>, %arg5: memref<8x1xf32, #tpu.memory_space<vmem>>, %arg6: memref<8x8xf32, #tpu.memory_space<vmem>>) attributes {dimension_semantics = [#tpu.dimension_semantics<parallel>], iteration_bounds = array<i64: 1>, scalar_prefetch = 0 : i64, scratch_operands = 0 : i64, tpu.core_type = #tpu.core_type<tc>, window_params = [{transform_indices = @transform_0, window_bounds = array<i64: 8, 32>}, {pipeline_mode = #tpu.pipeline_mode<synchronous>, transform_indices = @transform_1, window_bounds = array<i64: 32, 32>}, {pipeline_mode = #tpu.pipeline_mode<synchronous>, transform_indices = @transform_2, window_bounds = array<i64: 32, 1>}, {pipeline_mode = #tpu.pipeline_mode<synchronous>, transform_indices = @transform_3, window_bounds = array<i64: 8, 32>}, {pipeline_mode = #tpu.pipeline_mode<synchronous>, transform_indices = @transform_4, window_bounds = array<i64: 8, 1>}, {transform_indices = @transform_5, window_bounds = array<i64: 8, 8>}]} {
    %c0 = arith.constant 0 : index
    %c0_0 = arith.constant 0 : index
    %0 = vector.load %arg1[%c0, %c0_0] : memref<8x32xf32, #tpu.memory_space<vmem>>, vector<8x32xf32>
    %1 = arith.truncf %0 : vector<8x32xf32> to vector<8x32xbf16>
    %c0_1 = arith.constant 0 : index
    %c0_2 = arith.constant 0 : index
    %2 = vector.load %arg2[%c0_1, %c0_2] : memref<32x32xbf16, #tpu.memory_space<vmem>>, vector<32x32xbf16>
    %cst = arith.constant dense<0.000000e+00> : vector<32x8xf32>
    %3 = tpu.matmul %2, %1, %cst {dimension_numbers = #tpu.dot_dimension_numbers<[1], [1], [0], [0], [0, 0, 1, 0], [], []>} : vector<32x32xbf16>, vector<8x32xbf16>, vector<32x8xf32> -> vector<32x8xf32>
    %c0_3 = arith.constant 0 : index
    %c0_4 = arith.constant 0 : index
    %4 = vector.load %arg3[%c0_3, %c0_4] : memref<32x1xf32, #tpu.memory_space<vmem>>, vector<32x1xf32>
    %5 = vector.broadcast %4 : vector<32x1xf32> to vector<32x8xf32>
    %6 = arith.addf %3, %5 : vector<32x8xf32>
    %7 = math.tanh %6 : vector<32x8xf32>
    %c0_5 = arith.constant 0 : index
    %c0_6 = arith.constant 0 : index
    %8 = vector.load %arg4[%c0_5, %c0_6] : memref<8x32xbf16, #tpu.memory_space<vmem>>, vector<8x32xbf16>
    %9 = arith.truncf %7 : vector<32x8xf32> to vector<32x8xbf16>
    %cst_7 = arith.constant dense<0.000000e+00> : vector<8x8xf32>
    %10 = tpu.matmul %8, %9, %cst_7 {dimension_numbers = #tpu.dot_dimension_numbers<[1], [0], [0], [1], [0, 0, 1, 1], [], []>} : vector<8x32xbf16>, vector<32x8xbf16>, vector<8x8xf32> -> vector<8x8xf32>
    %c0_8 = arith.constant 0 : index
    %c0_9 = arith.constant 0 : index
    %11 = vector.load %arg5[%c0_8, %c0_9] : memref<8x1xf32, #tpu.memory_space<vmem>>, vector<8x1xf32>
    %12 = vector.broadcast %11 : vector<8x1xf32> to vector<8x8xf32>
    %13 = arith.addf %10, %12 : vector<8x8xf32>
    %c0_10 = arith.constant 0 : index
    %c0_11 = arith.constant 0 : index
    %14 = vector.load %arg6[%c0_10, %c0_11] : memref<8x8xf32, #tpu.memory_space<vmem>>, vector<8x8xf32>
    tpu.vector_store %arg6[%c0_10, %c0_11], %13 {strides = array<i32>} : memref<8x8xf32, #tpu.memory_space<vmem>>, vector<8x8xf32>,
    return
  }
  func.func @transform_0(%arg0: i32) -> (i32, i32) {
    %c0_i32 = arith.constant 0 : i32
    %c0_i32_0 = arith.constant 0 : i32
    return %arg0, %c0_i32 : i32, i32
  }
  func.func @transform_1(%arg0: i32) -> (i32, i32) {
    %c0_i32 = arith.constant 0 : i32
    %c0_i32_0 = arith.constant 0 : i32
    %c0_i32_1 = arith.constant 0 : i32
    return %c0_i32, %c0_i32_0 : i32, i32
  }
  func.func @transform_2(%arg0: i32) -> (i32, i32) {
    %c0_i32 = arith.constant 0 : i32
    %c0_i32_0 = arith.constant 0 : i32
    %c0_i32_1 = arith.constant 0 : i32
    return %c0_i32, %c0_i32_0 : i32, i32
  }
  func.func @transform_3(%arg0: i32) -> (i32, i32) {
    %c0_i32 = arith.constant 0 : i32
    %c0_i32_0 = arith.constant 0 : i32
    %c0_i32_1 = arith.constant 0 : i32
    return %c0_i32, %c0_i32_0 : i32, i32
  }
  func.func @transform_4(%arg0: i32) -> (i32, i32) {
    %c0_i32 = arith.constant 0 : i32
    %c0_i32_0 = arith.constant 0 : i32
    %c0_i32_1 = arith.constant 0 : i32
    return %c0_i32, %c0_i32_0 : i32, i32
  }
  func.func @transform_5(%arg0: i32) -> (i32, i32) {
    %c0_i32 = arith.constant 0 : i32
    %c0_i32_0 = arith.constant 0 : i32
    return %c0_i32, %arg0 : i32, i32
  }
}

</mosaic_0001>

<llo_original>
// kernel: tpu_custom_call.1
$region0: #{tpu_custom_call.1}
  #allocation0 [shape = 'u32[]', space=smem, size = 0x4, offset = 0x4, fixed_abs, tag = 'smem constant byte address 0x4 - core index']
  #allocation1 [shape = 'u32[144,128]{1,0:T(1,128)}', space=vmem, size = 0x12000, scoped, tag = 'internal scratch']
  %s0 = inlined_call_operand.vmem [shape: f32[8,32], index: 0, kind: input, shape index: {}]
  %s1 = inlined_call_operand.vmem [shape: bf16[32,32], index: 1, kind: input, shape index: {}]
  %s2 = inlined_call_operand.vmem [shape: f32[32,1], index: 2, kind: input, shape index: {}]
  %s3 = inlined_call_operand.vmem [shape: bf16[8,32], index: 3, kind: input, shape index: {}]
  %s4 = inlined_call_operand.vmem [shape: f32[8,1], index: 4, kind: input, shape index: {}]
  %s5 = inlined_call_operand.hbm [shape: f32[8,8], index: 5, kind: output, shape index: {}]
  %s6 = sld [smem:[#allocation0]]
  $region30: #{tpu_custom_call.1} parent=0
    _
  %s8 = ssub.s32 1, %s6
  %s9 = scalar_select 0, %s8, %s6
  $region1: #{tpu_custom_call.1} parent=0
    #allocation2 [shape = 'u8[4096]{0}', space=vmem, size = 0x1000, scoped, tag = 'output window, operand 0, single buffered']
    #allocation3 [shape = 's32[1]{0}', space=sflag, size = 0x4, scoped, tag = 'scoped memory for tpu_custom_call.1']
    %10 = vsyncpa [#allocation3], 0
    // Predicated region
    $region2: #{tpu_custom_call.1} parent=1 // pred_check
      _
    $region3: #{tpu_custom_call.1} parent=1 // pred_check_branch
      %12 = sbr.rel (0) target = $region5
    $region4: #{tpu_custom_call.1} parent=1 // pred_region
      _
    $region5: #{tpu_custom_call.1} parent=1 // pred_fallthru
      _
    // Predicated region
    $region6: #{tpu_custom_call.1} parent=1 // pred_check
      _
    $region7: #{tpu_custom_call.1} parent=1 // pred_check_branch
      %14 = sbr.rel (0) target = $region9
    $region8: #{tpu_custom_call.1} parent=1 // pred_region
      _
    $region9: #{tpu_custom_call.1} parent=1 // pred_fallthru
      _
    // Predicated region
    $region10: #{tpu_custom_call.1} parent=1 // pred_check
      _
    $region11: #{tpu_custom_call.1} parent=1 // pred_check_branch
      %16 = sbr.rel (0) target = $region13
    $region12: #{tpu_custom_call.1} parent=1 // pred_region
      _
    $region13: #{tpu_custom_call.1} parent=1 // pred_fallthru
      _
    // Predicated region
    $region14: #{tpu_custom_call.1} parent=1 // pred_check
      _
    $region15: #{tpu_custom_call.1} parent=1 // pred_check_branch
      %18 = sbr.rel (0) target = $region17
    $region16: #{tpu_custom_call.1} parent=1 // pred_region
      _
    $region17: #{tpu_custom_call.1} parent=1 // pred_fallthru
      _
    // Predicated region
    $region18: #{tpu_custom_call.1} parent=1 // pred_check
      _
    $region19: #{tpu_custom_call.1} parent=1 // pred_check_branch
      %20 = sbr.rel (0) target = $region21
    $region20: #{tpu_custom_call.1} parent=1 // pred_region
      _
    $region21: #{tpu_custom_call.1} parent=1 // pred_fallthru
      _
    %v22 = vld [vmem:[%s0] sm:$0xff]
    %v23 = vpack.c.bf16 %v22, %v22
    %v24 = vld [vmem:[%s1] sm:$0xf]
    %v25 = vld [vmem:[%s1 + $0x4] sm:$0xf]
    %v26 = vld [vmem:[%s1 + $0x8] sm:$0xf]
    %v27 = vld [vmem:[%s1 + $0xc] sm:$0xf]
    %v28 = vld [vmem:[%s2] sm:$0xff]
    %v29 = vld [vmem:[%s2 + $0x8] sm:$0xff]
    %v30 = vld [vmem:[%s2 + $0x10] sm:$0xff]
    %v31 = vld [vmem:[%s2 + $0x18] sm:$0xff]
    %33 = vset.pattern.permute.xlu0 0
    %34 = vperm.xlu0 %33, %v28
    %v35 = vpop.permute.xlu0 %34
    %38 = vset.pattern.permute.xlu0 0
    %39 = vperm.xlu0 %38, %v29
    %v40 = vpop.permute.xlu0 %39
    %43 = vset.pattern.permute.xlu0 0
    %44 = vperm.xlu0 %43, %v30
    %v45 = vpop.permute.xlu0 %44
    %48 = vset.pattern.permute.xlu0 0
    %49 = vperm.xlu0 %48, %v31
    %v50 = vpop.permute.xlu0 %49
    %v56 = vunpack.c.l.b16 %v24
    %v57 = vunpack.c.l.b16 %v25
    %v58 = vunpack.c.l.b16 %v26
    %v59 = vunpack.c.l.b16 %v27
    %v60 = vpack.c.b16 %v57, %v56
    %v61 = vpack.c.b16 %v59, %v58
    %vm62 = vcmask 261120
    %v64 = vsel %vm62, %v60, 0
    %v67 = vsel %vm62, %v61, 0
    %v70 = vsel %vm62, %v23, 0
    %72 = vmatprep.subr.bf16.mxu0 0
    %73 = vmatpush1.bf16.xpose.msra.mxu0 0
    %74 = vmatprep.subr.bf16.mxu0 0
    %75 = vmatpush1.bf16.xpose.msra.mxu0 0
    %76 = vmatprep.subr.bf16.mxu0 0
    %77 = vmatpush1.bf16.xpose.msra.mxu0 0
    %78 = vmatprep.subr.bf16.mxu0 0
    %79 = vmatpush1.bf16.xpose.msra.mxu0 0
    %80 = vmatprep.subr.bf16.mxu0 0
    %81 = vmatpush1.bf16.xpose.msra.mxu0 0
    %82 = vmatprep.subr.bf16.mxu0 0
    %83 = vmatpush1.bf16.xpose.msra.mxu0 0
    %84 = vmatprep.subr.bf16.mxu0 0
    %85 = vmatpush1.bf16.xpose.msra.mxu0 0
    %86 = vmatprep.subr.bf16.mxu0 0
    %87 = vmatpush1.bf16.xpose.msra.mxu0 %v70
    %88 = vmatprep.subr.bf16.mxu0 0
    %89 = vmatpush2.bf16.xpose.msra.mxu0 0
    %90 = vmatprep.subr.bf16.mxu0 0
    %91 = vmatpush2.bf16.xpose.msra.mxu0 0
    %92 = vmatprep.subr.bf16.mxu0 0
    %93 = vmatpush2.bf16.xpose.msra.mxu0 0
    %94 = vmatprep.subr.bf16.mxu0 0
    %95 = vmatpush2.bf16.xpose.msra.mxu0 0
    %96 = vmatprep.subr.bf16.mxu0 0
    %97 = vmatpush2.bf16.xpose.msra.mxu0 0
    %98 = vmatprep.subr.bf16.mxu0 0
    %99 = vmatpush2.bf16.xpose.msra.mxu0 0
    %100 = vmatprep.subr.bf16.mxu0 0
    %101 = vmatpush2.bf16.xpose.msra.mxu0 0
    %102 = vmatprep.subr.bf16.mxu0 0
    %103 = vmatpush2.bf16.xpose.msra.mxu0 0
    %104 = vmatprep.mubr.bf16.mxu0 0
    %105 = vmatmul.mubr.bf16.gmra.mxu0 %v64
    %v106 = vpop.f32.mrf.mxu0
    %v107 = vadd.f32 %v35, %v106
    %v108 = vpop.f32.mrf.mxu0
    %v109 = vpop.f32.mrf.mxu0
    %v110 = vadd.f32 %v40, %v109
    %v111 = vpop.f32.mrf.mxu0
    %112 = vmatprep.mubr.bf16.mxu0 0
    %113 = vmatmul.mubr.bf16.gmra.mxu0 %v67
    %v114 = vpop.f32.mrf.mxu0
    %v115 = vadd.f32 %v45, %v114
    %v116 = vpop.f32.mrf.mxu0
    %v117 = vpop.f32.mrf.mxu0
    %v118 = vadd.f32 %v50, %v117
    %v119 = vpop.f32.mrf.mxu0
    %120 = vdwg.mxu0
    %v121 = vtanh.pop %v107
    %v122 = vtanh.pop %v110
    %v123 = vtanh.pop %v115
    %v124 = vtanh.pop %v118
    %v125 = vld [vmem:[%s3] sm:$0xf]
    %v126 = vpack.c.bf16 %v122, %v121
    %v127 = vpack.c.bf16 %v124, %v123
    %v128 = vld [vmem:[%s4] sm:$0xff]
    %130 = vset.pattern.permute.xlu0 0
    %131 = vperm.xlu0 %130, %v128
    %v132 = vpop.permute.xlu0 %131
    %v135 = vsel %vm62, %v125, 0
    %137 = vmatprep.subr.bf16.mxu0 0
    %138 = vmatpush1.bf16.msra.mxu0 0
    %139 = vmatprep.subr.bf16.mxu0 0
    %140 = vmatpush1.bf16.msra.mxu0 0
    %141 = vmatprep.subr.bf16.mxu0 0
    %142 = vmatpush1.bf16.msra.mxu0 0
    %143 = vmatprep.subr.bf16.mxu0 0
    %144 = vmatpush1.bf16.msra.mxu0 0
    %145 = vmatprep.subr.bf16.mxu0 0
    %146 = vmatpush1.bf16.msra.mxu0 0
    %147 = vmatprep.subr.bf16.mxu0 0
    %148 = vmatpush1.bf16.msra.mxu0 0
    %149 = vmatprep.subr.bf16.mxu0 0
    %150 = vmatpush1.bf16.msra.mxu0 %v127
    %151 = vmatprep.subr.bf16.mxu0 0
    %152 = vmatpush1.bf16.msra.mxu0 %v126
    %153 = vmatprep.subr.bf16.mxu0 0
    %154 = vmatpush2.bf16.msra.mxu0 0
    %155 = vmatprep.subr.bf16.mxu0 0
    %156 = vmatpush2.bf16.msra.mxu0 0
    %157 = vmatprep.subr.bf16.mxu0 0
    %158 = vmatpush2.bf16.msra.mxu0 0
    %159 = vmatprep.subr.bf16.mxu0 0
    %160 = vmatpush2.bf16.msra.mxu0 0
    %161 = vmatprep.subr.bf16.mxu0 0
    %162 = vmatpush2.bf16.msra.mxu0 0
    %163 = vmatprep.subr.bf16.mxu0 0
    %164 = vmatpush2.bf16.msra.mxu0 0
    %165 = vmatprep.subr.bf16.mxu0 0
    %166 = vmatpush2.bf16.msra.mxu0 0
    %167 = vmatprep.subr.bf16.mxu0 0
    %168 = vmatpush2.bf16.msra.mxu0 0
    %169 = vmatprep.mubr.bf16.mxu0 0
    %170 = vmatmul.mubr.bf16.gmra.mxu0 %v135
    %v171 = vpop.f32.mrf.mxu0
    %v172 = vadd.f32 %v132, %v171
    %v173 = vpop.f32.mrf.mxu0
    %v174 = vpop.f32.mrf.mxu0
    %v175 = vpop.f32.mrf.mxu0
    %176 = vdwg.mxu0
    %vm177 = vcmask 64512
    %178 = vst.msk [vmem:[#allocation2] sm:$0xff] %vm177, %v172
    // Predicated region
    $region22: #{tpu_custom_call.1} parent=1 // pred_check
      _
    $region23: #{tpu_custom_call.1} parent=1 // pred_check_branch
      %180 = sbr.rel (0) target = $region25
    $region24: #{tpu_custom_call.1} parent=1 // pred_region
      %s182 = ssub.s32 128, 128
      %183 = vsyncadd [#allocation3], %s182
      %s185 = sshll.u32 [#allocation2], 4
      %s186 = int_to_ptr.vmem [resolvable:$true] %s185
      %188 = dma.vmem_to_hbm [thread:$0]  %s186, 128, %s5, [#allocation3]
    $region25: #{tpu_custom_call.1} parent=1 // pred_fallthru
      _
    // Predicated region
    $region26: #{tpu_custom_call.1} parent=1 // pred_check
      _
    $region27: #{tpu_custom_call.1} parent=1 // pred_check_branch
      %190 = sbr.rel (0) target = $region29
    $region28: #{tpu_custom_call.1} parent=1 // pred_region
      %191 = dma.done [#allocation3], 128
    $region29: #{tpu_custom_call.1} parent=1 // pred_fallthru
      _
    %192 = vsyncpa [#allocation3], 1

</llo_original>
